<compile_context>
chip_gen: v5e
topology: v5e:2x2
jax: 0.10.0
libtpu: 0.0.40
codegen_flags: <defaults>
</compile_context>

<pallas_src>
import jax
import jax.numpy as jnp
from jax import lax
from jax.experimental import pallas as pl
from jax.experimental.pallas import tpu as pltpu

N_OUT = 24    # true output width of the Linear layer
N_PAD = 128   # lane-dense padded output width


def _classifier_q_kernel(x_ref, w_ref, b_ref, o_ref):
    # x_ref: (TB, D) bf16 ; w_ref: (N_PAD, D) bf16 ; b_ref: (1, N_PAD) f32
    # Contract dim 1 of x with dim 1 of w  ==  x @ w.T  -> (TB, N_PAD) f32 on MXU.
    z = lax.dot_general(
        x_ref[...], w_ref[...],
        dimension_numbers=(((1,), (1,)), ((), ())),
        preferred_element_type=jnp.float32,
    )
    z = z + b_ref[...]                                     # broadcast (1, N_PAD)
    # sigmoid(z) = 1 / (1 + exp(-z)); exp + approx-reciprocal both run on the EUP.
    o_ref[...] = pl.reciprocal(1.0 + jnp.exp(-z), approx=True)


def classifier_q_forward(x_nchw, weight, bias, *, tb=256):
    """InfoGAN ClassifierQ forward.

    x_nchw: (B, C, H, W) with C*H*W == D ; weight: (24, D) ; bias: (24,)
    Returns sigmoid(x.reshape(B, -1) @ weight.T + bias) as (B, 24) float32.
    """
    B = x_nchw.shape[0]
    x_flat = x_nchw.reshape(B, -1)                          # == input.view(B, -1)
    D = x_flat.shape[1]

    # bf16 inputs for the bandwidth-bound x stream; accumulation stays f32.
    x_bf16 = x_flat.astype(jnp.bfloat16)
    # Zero-pad the output dim 24 -> 128 so the kernel's stores are lane-dense.
    w_pad = jnp.zeros((N_PAD, D), jnp.bfloat16).at[:N_OUT].set(
        weight.astype(jnp.bfloat16))
    b_pad = jnp.zeros((1, N_PAD), jnp.float32).at[0, :N_OUT].set(
        bias.astype(jnp.float32))

    # Batch tiling: single block if B is small, otherwise TB-row pipelined tiles.
    tb = B if B <= tb else tb
    grid = (pl.cdiv(B, tb),)

    cost = pl.CostEstimate(
        flops=2 * B * D * N_PAD,
        transcendentals=2 * B * N_PAD,
        bytes_accessed=B * D * 2 + N_PAD * D * 2 + N_PAD * 4 + B * N_PAD * 4,
    )

    out_pad = pl.pallas_call(
        _classifier_q_kernel,
        out_shape=jax.ShapeDtypeStruct((B, N_PAD), jnp.float32),
        grid_spec=pltpu.PrefetchScalarGridSpec(
            num_scalar_prefetch=0,
            grid=grid,
            in_specs=[
                pl.BlockSpec((tb, D), lambda i: (i, 0)),      # x tile (pipelined)
                pl.BlockSpec((N_PAD, D), lambda i: (0, 0)),   # weight (resident)
                pl.BlockSpec((1, N_PAD), lambda i: (0, 0)),   # bias (resident)
            ],
            out_specs=pl.BlockSpec((tb, N_PAD), lambda i: (i, 0)),
        ),
        compiler_params=pltpu.CompilerParams(
            dimension_semantics=("parallel",),   # shard batch tiles across TCs (v7x)
        ),
        cost_estimate=cost,
    )(x_bf16, w_pad, b_pad)

    return out_pad[:, :N_OUT]


if __name__ == "__main__":
    # Shapes consistent with the module: args.input_dim = 4
    #   -> flattened feature dim D = input_dim * 8 * 4 * 4 = 512
    #   -> conv-style input (B, input_dim*8, 4, 4) = (2, 32, 4, 4)
    input_dim = 4
    B = 2
    D = input_dim * 8 * 4 * 4  # 512

    key = jax.random.PRNGKey(0)
    kx, kw, kb = jax.random.split(key, 3)

    x = jax.random.normal(kx, (B, input_dim * 8, 4, 4), dtype=jnp.float32)
    weight = jax.random.normal(kw, (24, D), dtype=jnp.float32) * 0.02
    bias = jax.random.normal(kb, (24,), dtype=jnp.float32) * 0.02

    out = classifier_q_forward(x, weight, bias)
    out = jax.block_until_ready(out)

    # Pure-JAX f32 reference (same math as the PyTorch module).
    ref = jax.nn.sigmoid(x.reshape(B, -1) @ weight.T + bias)
    assert out.shape == (B, 24)
    # Tolerance accounts for bf16 matmul inputs + approximate reciprocal.
    assert jnp.allclose(out, ref, atol=1e-2, rtol=1e-2), (
        float(jnp.max(jnp.abs(out - ref))))

    print("KERNEL_OK")
</pallas_src>

<mosaic_0001>
module attributes {stable_mosaic.version = 11 : i64} {
  func.func @_classifier_q_kernel(%arg0: i32, %arg1: memref<2x512xbf16, #tpu.memory_space<vmem>>, %arg2: memref<128x512xbf16, #tpu.memory_space<vmem>>, %arg3: memref<1x128xf32, #tpu.memory_space<vmem>>, %arg4: memref<2x128xf32, #tpu.memory_space<vmem>>) attributes {dimension_semantics = [#tpu.dimension_semantics<parallel>], iteration_bounds = array<i64: 1>, scalar_prefetch = 0 : i64, scratch_operands = 0 : i64, tpu.core_type = #tpu.core_type<tc>, window_params = [{transform_indices = @transform_0, window_bounds = array<i64: 2, 512>}, {pipeline_mode = #tpu.pipeline_mode<synchronous>, transform_indices = @transform_1, window_bounds = array<i64: 128, 512>}, {pipeline_mode = #tpu.pipeline_mode<synchronous>, transform_indices = @transform_2, window_bounds = array<i64: 1, 128>}, {transform_indices = @transform_3, window_bounds = array<i64: 2, 128>}]} {
    %c0 = arith.constant 0 : index
    %c0_0 = arith.constant 0 : index
    %0 = vector.load %arg1[%c0, %c0_0] : memref<2x512xbf16, #tpu.memory_space<vmem>>, vector<2x512xbf16>
    %c0_1 = arith.constant 0 : index
    %c0_2 = arith.constant 0 : index
    %1 = vector.load %arg2[%c0_1, %c0_2] : memref<128x512xbf16, #tpu.memory_space<vmem>>, vector<128x512xbf16>
    %cst = arith.constant dense<0.000000e+00> : vector<2x128xf32>
    %2 = tpu.matmul %0, %1, %cst {dimension_numbers = #tpu.dot_dimension_numbers<[1], [1], [0], [0], [0, 0, 1, 0], [], []>} : vector<2x512xbf16>, vector<128x512xbf16>, vector<2x128xf32> -> vector<2x128xf32>
    %c0_3 = arith.constant 0 : index
    %c0_4 = arith.constant 0 : index
    %3 = vector.load %arg3[%c0_3, %c0_4] : memref<1x128xf32, #tpu.memory_space<vmem>>, vector<1x128xf32>
    %4 = vector.broadcast %3 : vector<1x128xf32> to vector<2x128xf32>
    %5 = arith.addf %2, %4 : vector<2x128xf32>
    %cst_5 = arith.constant 0.000000e+00 : f32
    %6 = vector.broadcast %cst_5 : f32 to vector<2x128xf32>
    %7 = arith.subf %6, %5 : vector<2x128xf32>
    %8 = math.exp %7 : vector<2x128xf32>
    %cst_6 = arith.constant 1.000000e+00 : f32
    %9 = vector.broadcast %cst_6 : f32 to vector<2x128xf32>
    %10 = arith.addf %9, %8 : vector<2x128xf32>
    %11 = tpu.reciprocal %10 {approx = true} : vector<2x128xf32> -> vector<2x128xf32>
    %c0_7 = arith.constant 0 : index
    %c0_8 = arith.constant 0 : index
    %12 = vector.load %arg4[%c0_7, %c0_8] : memref<2x128xf32, #tpu.memory_space<vmem>>, vector<2x128xf32>
    tpu.vector_store %arg4[%c0_7, %c0_8], %11 {strides = array<i32>} : memref<2x128xf32, #tpu.memory_space<vmem>>, vector<2x128xf32>,
    return
  }
  func.func @transform_0(%arg0: i32) -> (i32, i32) {
    %c0_i32 = arith.constant 0 : i32
    %c0_i32_0 = arith.constant 0 : i32
    return %arg0, %c0_i32 : i32, i32
  }
  func.func @transform_1(%arg0: i32) -> (i32, i32) {
    %c0_i32 = arith.constant 0 : i32
    %c0_i32_0 = arith.constant 0 : i32
    %c0_i32_1 = arith.constant 0 : i32
    return %c0_i32, %c0_i32_0 : i32, i32
  }
  func.func @transform_2(%arg0: i32) -> (i32, i32) {
    %c0_i32 = arith.constant 0 : i32
    %c0_i32_0 = arith.constant 0 : i32
    %c0_i32_1 = arith.constant 0 : i32
    return %c0_i32, %c0_i32_0 : i32, i32
  }
  func.func @transform_3(%arg0: i32) -> (i32, i32) {
    %c0_i32 = arith.constant 0 : i32
    %c0_i32_0 = arith.constant 0 : i32
    return %arg0, %c0_i32 : i32, i32
  }
}

</mosaic_0001>

<llo_original>
// kernel: tpu_custom_call.1
$region0: #{tpu_custom_call.1}
  #allocation0 [shape = 'u32[]', space=smem, size = 0x4, offset = 0x4, fixed_abs, tag = 'smem constant byte address 0x4 - core index']
  #allocation1 [shape = 'u32[72,128]{1,0:T(1,128)}', space=vmem, size = 0x9000, scoped, tag = 'internal scratch']
  %s0 = inlined_call_operand.hbm [shape: bf16[2,512], index: 0, kind: input, shape index: {}]
  %s1 = inlined_call_operand.hbm [shape: bf16[128,512], index: 1, kind: input, shape index: {}]
  %s2 = inlined_call_operand.vmem [shape: f32[1,128], index: 2, kind: input, shape index: {}]
  %s3 = inlined_call_operand.hbm [shape: f32[2,128], index: 3, kind: output, shape index: {}]
  %s4 = sld [smem:[#allocation0]]
  $region30: #{tpu_custom_call.1} parent=0
    _
  %s6 = ssub.s32 1, %s4
  %s7 = scalar_select 0, %s6, %s4
  $region1: #{tpu_custom_call.1} parent=0
    #allocation2 [shape = 'u8[2048]{0}', space=vmem, size = 0x800, scoped, tag = 'input window, operand 0, single buffered']
    #allocation3 [shape = 's32[1]{0}', space=sflag, size = 0x4, scoped, tag = 'scoped memory for tpu_custom_call.1']
    #allocation4 [shape = 's32[1]{0}', space=sflag, size = 0x4, scoped, tag = 'scoped memory for tpu_custom_call.1']
    #allocation5 [shape = 'u8[131072]{0}', space=vmem, size = 0x20000, scoped, tag = 'input window, operand 1, single buffered']
    #allocation6 [shape = 's32[1]{0}', space=sflag, size = 0x4, scoped, tag = 'scoped memory for tpu_custom_call.1']
    #allocation7 [shape = 'u8[1024]{0}', space=vmem, size = 0x400, scoped, tag = 'output window, operand 0, single buffered']
    %8 = vsyncpa [#allocation3], 0
    %9 = vsyncpa [#allocation6], 0
    %10 = vsyncpa [#allocation4], 0
    // Predicated region
    $region2: #{tpu_custom_call.1} parent=1 // pred_check
      _
    $region3: #{tpu_custom_call.1} parent=1 // pred_check_branch
      %12 = sbr.rel (0) target = $region5
    $region4: #{tpu_custom_call.1} parent=1 // pred_region
      %14 = vsyncadd [#allocation3], 0
      %s16 = sshll.u32 %s0, 4
      %s17 = int_to_ptr.hbm [resolvable:$true] %s16
      %s18 = sshll.u32 [#allocation2], 4
      %s19 = int_to_ptr.vmem [resolvable:$true] %s18
      %21 = dma.hbm_to_vmem [thread:$0]  %s17, 64, %s19, [#allocation3]
    $region5: #{tpu_custom_call.1} parent=1 // pred_fallthru
      _
    // Predicated region
    $region6: #{tpu_custom_call.1} parent=1 // pred_check
      _
    $region7: #{tpu_custom_call.1} parent=1 // pred_check_branch
      %23 = sbr.rel (0) target = $region9
    $region8: #{tpu_custom_call.1} parent=1 // pred_region
      %25 = vsyncadd [#allocation6], 0
      %s26 = sshll.u32 %s1, 4
      %s27 = int_to_ptr.hbm [resolvable:$true] %s26
      %s28 = sshll.u32 [#allocation5], 4
      %s29 = int_to_ptr.vmem [resolvable:$true] %s28
      %34 = dma.hbm_to_vmem [thread:$0]  %s27, 4096, %s29, [#allocation6], 256, 256, 16
    $region9: #{tpu_custom_call.1} parent=1 // pred_fallthru
      _
    // Predicated region
    $region10: #{tpu_custom_call.1} parent=1 // pred_check
      _
    $region11: #{tpu_custom_call.1} parent=1 // pred_check_branch
      %36 = sbr.rel (0) target = $region13
    $region12: #{tpu_custom_call.1} parent=1 // pred_region
      _
    $region13: #{tpu_custom_call.1} parent=1 // pred_fallthru
      _
    // Predicated region
    $region14: #{tpu_custom_call.1} parent=1 // pred_check
      _
    $region15: #{tpu_custom_call.1} parent=1 // pred_check_branch
      %38 = sbr.rel (0) target = $region17
    $region16: #{tpu_custom_call.1} parent=1 // pred_region
      %40 = dma.done [#allocation3], 64
    $region17: #{tpu_custom_call.1} parent=1 // pred_fallthru
      _
    // Predicated region
    $region18: #{tpu_custom_call.1} parent=1 // pred_check
      _
    $region19: #{tpu_custom_call.1} parent=1 // pred_check_branch
      %42 = sbr.rel (0) target = $region21
    $region20: #{tpu_custom_call.1} parent=1 // pred_region
      %44 = dma.done [#allocation6], 4096
    $region21: #{tpu_custom_call.1} parent=1 // pred_fallthru
      _
    %v45 = vld [vmem:[#allocation2] sm:$0xf]
    %v46 = vld [vmem:[#allocation5] sm:$0xff]
    %v47 = vld [vmem:[#allocation5 + $0x8] sm:$0xff]
    %v48 = vld [vmem:[#allocation5 + $0x10] sm:$0xff]
    %v49 = vld [vmem:[#allocation5 + $0x18] sm:$0xff]
    %v50 = vld [vmem:[#allocation5 + $0x20] sm:$0xff]
    %v51 = vld [vmem:[#allocation5 + $0x28] sm:$0xff]
    %v52 = vld [vmem:[#allocation5 + $0x30] sm:$0xff]
    %v53 = vld [vmem:[#allocation5 + $0x38] sm:$0xff]
    %v54 = vld [vmem:[#allocation5 + $0x40] sm:$0xff]
    %v55 = vld [vmem:[#allocation5 + $0x48] sm:$0xff]
    %v56 = vld [vmem:[#allocation5 + $0x50] sm:$0xff]
    %v57 = vld [vmem:[#allocation5 + $0x58] sm:$0xff]
    %v58 = vld [vmem:[#allocation5 + $0x60] sm:$0xff]
    %v59 = vld [vmem:[#allocation5 + $0x68] sm:$0xff]
    %v60 = vld [vmem:[#allocation5 + $0x70] sm:$0xff]
    %v61 = vld [vmem:[#allocation5 + $0x78] sm:$0xff]
    %v62 = vld [vmem:[#allocation5 + $0x80] sm:$0xff]
    %v63 = vld [vmem:[#allocation5 + $0x88] sm:$0xff]
    %v64 = vld [vmem:[#allocation5 + $0x90] sm:$0xff]
    %v65 = vld [vmem:[#allocation5 + $0x98] sm:$0xff]
    %v66 = vld [vmem:[#allocation5 + $0xa0] sm:$0xff]
    %v67 = vld [vmem:[#allocation5 + $0xa8] sm:$0xff]
    %v68 = vld [vmem:[#allocation5 + $0xb0] sm:$0xff]
    %v69 = vld [vmem:[#allocation5 + $0xb8] sm:$0xff]
    %v70 = vld [vmem:[#allocation5 + $0xc0] sm:$0xff]
    %v71 = vld [vmem:[#allocation5 + $0xc8] sm:$0xff]
    %v72 = vld [vmem:[#allocation5 + $0xd0] sm:$0xff]
    %v73 = vld [vmem:[#allocation5 + $0xd8] sm:$0xff]
    %v74 = vld [vmem:[#allocation5 + $0xe0] sm:$0xff]
    %v75 = vld [vmem:[#allocation5 + $0xe8] sm:$0xff]
    %v76 = vld [vmem:[#allocation5 + $0xf0] sm:$0xff]
    %v77 = vld [vmem:[#allocation5 + $0xf8] sm:$0xff]
    %v78 = vld [vmem:[%s2] sm:$0x1]
    %v80 = vperm.slane %v78, 0
    %83 = vst [vmem:[#allocation1] ss:$9 sm:$0xff] %v45
    %v84 = vld [vmem:[#allocation1] sm:$0xff]
    %v85 = vld [vmem:[#allocation1 + $0x9] sm:$0xff]
    %v86 = vld [vmem:[#allocation1 + $0x12] sm:$0xff]
    %v87 = vld [vmem:[#allocation1 + $0x1b] sm:$0xff]
    %v124 = vunpack.c.l.b16 %v46
    %v125 = vunpack.c.h.b16 %v46
    %v126 = vunpack.c.l.b16 %v47
    %v127 = vunpack.c.h.b16 %v47
    %v128 = vunpack.c.l.b16 %v48
    %v129 = vunpack.c.h.b16 %v48
    %v130 = vunpack.c.l.b16 %v49
    %v131 = vunpack.c.h.b16 %v49
    %v132 = vunpack.c.l.b16 %v50
    %v133 = vunpack.c.h.b16 %v50
    %v134 = vunpack.c.l.b16 %v51
    %v135 = vunpack.c.h.b16 %v51
    %v136 = vunpack.c.l.b16 %v52
    %v137 = vunpack.c.h.b16 %v52
    %v138 = vunpack.c.l.b16 %v53
    %v139 = vunpack.c.h.b16 %v53
    %v140 = vunpack.c.l.b16 %v54
    %v141 = vunpack.c.h.b16 %v54
    %v142 = vunpack.c.l.b16 %v55
    %v143 = vunpack.c.h.b16 %v55
    %v144 = vunpack.c.l.b16 %v56
    %v145 = vunpack.c.h.b16 %v56
    %v146 = vunpack.c.l.b16 %v57
    %v147 = vunpack.c.h.b16 %v57
    %v148 = vunpack.c.l.b16 %v58
    %v149 = vunpack.c.h.b16 %v58
    %v150 = vunpack.c.l.b16 %v59
    %v151 = vunpack.c.h.b16 %v59
    %v152 = vunpack.c.l.b16 %v60
    %v153 = vunpack.c.h.b16 %v60
    %v154 = vunpack.c.l.b16 %v61
    %v155 = vunpack.c.h.b16 %v61
    %v156 = vunpack.c.l.b16 %v62
    %v157 = vunpack.c.h.b16 %v62
    %v158 = vunpack.c.l.b16 %v63
    %v159 = vunpack.c.h.b16 %v63
    %v160 = vunpack.c.l.b16 %v64
    %v161 = vunpack.c.h.b16 %v64
    %v162 = vunpack.c.l.b16 %v65
    %v163 = vunpack.c.h.b16 %v65
    %v164 = vunpack.c.l.b16 %v66
    %v165 = vunpack.c.h.b16 %v66
    %v166 = vunpack.c.l.b16 %v67
    %v167 = vunpack.c.h.b16 %v67
    %v168 = vunpack.c.l.b16 %v68
    %v169 = vunpack.c.h.b16 %v68
    %v170 = vunpack.c.l.b16 %v69
    %v171 = vunpack.c.h.b16 %v69
    %v172 = vunpack.c.l.b16 %v70
    %v173 = vunpack.c.h.b16 %v70
    %v174 = vunpack.c.l.b16 %v71
    %v175 = vunpack.c.h.b16 %v71
    %v176 = vunpack.c.l.b16 %v72
    %v177 = vunpack.c.h.b16 %v72
    %v178 = vunpack.c.l.b16 %v73
    %v179 = vunpack.c.h.b16 %v73
    %v180 = vunpack.c.l.b16 %v74
    %v181 = vunpack.c.h.b16 %v74
    %v182 = vunpack.c.l.b16 %v75
    %v183 = vunpack.c.h.b16 %v75
    %v184 = vunpack.c.l.b16 %v76
    %v185 = vunpack.c.h.b16 %v76
    %v186 = vunpack.c.l.b16 %v77
    %v187 = vunpack.c.h.b16 %v77
    %v188 = vpack.c.b16 %v128, %v124
    %v189 = vpack.c.b16 %v129, %v125
    %v190 = vpack.c.b16 %v130, %v126
    %v191 = vpack.c.b16 %v131, %v127
    %v192 = vpack.c.b16 %v136, %v132
    %v193 = vpack.c.b16 %v137, %v133
    %v194 = vpack.c.b16 %v138, %v134
    %v195 = vpack.c.b16 %v139, %v135
    %v196 = vpack.c.b16 %v144, %v140
    %v197 = vpack.c.b16 %v145, %v141
    %v198 = vpack.c.b16 %v146, %v142
    %v199 = vpack.c.b16 %v147, %v143
    %v200 = vpack.c.b16 %v152, %v148
    %v201 = vpack.c.b16 %v153, %v149
    %v202 = vpack.c.b16 %v154, %v150
    %v203 = vpack.c.b16 %v155, %v151
    %v204 = vpack.c.b16 %v160, %v156
    %v205 = vpack.c.b16 %v161, %v157
    %v206 = vpack.c.b16 %v162, %v158
    %v207 = vpack.c.b16 %v163, %v159
    %v208 = vpack.c.b16 %v168, %v164
    %v209 = vpack.c.b16 %v169, %v165
    %v210 = vpack.c.b16 %v170, %v166
    %v211 = vpack.c.b16 %v171, %v167
    %v212 = vpack.c.b16 %v176, %v172
    %v213 = vpack.c.b16 %v177, %v173
    %v214 = vpack.c.b16 %v178, %v174
    %v215 = vpack.c.b16 %v179, %v175
    %v216 = vpack.c.b16 %v184, %v180
    %v217 = vpack.c.b16 %v185, %v181
    %v218 = vpack.c.b16 %v186, %v182
    %v219 = vpack.c.b16 %v187, %v183
    %252 = vmatpush.bf16.xpose.msra.mxu0 %v216
    %253 = vmatpush.bf16.xpose.msra.mxu0 %v212
    %254 = vmatpush.bf16.xpose.msra.mxu0 %v208
    %255 = vmatpush.bf16.xpose.msra.mxu0 %v204
    %256 = vmatpush.bf16.xpose.msra.mxu0 %v200
    %257 = vmatpush.bf16.xpose.msra.mxu0 %v196
    %258 = vmatpush.bf16.xpose.msra.mxu0 %v192
    %259 = vmatpush.bf16.xpose.msra.mxu0 %v188
    %260 = vmatmul.bf16.gmra.mxu0 %v84
    %v261 = vpop.f32.mrf.mxu0
    %v262 = vadd.f32 %v80, %v261
    %v263 = vpop.f32.mrf.mxu0
    %264 = vdwg.mxu0
    %265 = vmatpush.bf16.xpose.msra.mxu0 %v217
    %266 = vmatpush.bf16.xpose.msra.mxu0 %v213
    %267 = vmatpush.bf16.xpose.msra.mxu0 %v209
    %268 = vmatpush.bf16.xpose.msra.mxu0 %v205
    %269 = vmatpush.bf16.xpose.msra.mxu0 %v201
    %270 = vmatpush.bf16.xpose.msra.mxu0 %v197
    %271 = vmatpush.bf16.xpose.msra.mxu0 %v193
    %272 = vmatpush.bf16.xpose.msra.mxu0 %v189
    %273 = vmatmul.bf16.gmra.mxu0 %v85
    %v274 = vpop.f32.mrf.mxu0
    %v275 = vadd.f32 %v262, %v274
    %v276 = vpop.f32.mrf.mxu0
    %277 = vdwg.mxu0
    %278 = vmatpush.bf16.xpose.msra.mxu0 %v218
    %279 = vmatpush.bf16.xpose.msra.mxu0 %v214
    %280 = vmatpush.bf16.xpose.msra.mxu0 %v210
    %281 = vmatpush.bf16.xpose.msra.mxu0 %v206
    %282 = vmatpush.bf16.xpose.msra.mxu0 %v202
    %283 = vmatpush.bf16.xpose.msra.mxu0 %v198
    %284 = vmatpush.bf16.xpose.msra.mxu0 %v194
    %285 = vmatpush.bf16.xpose.msra.mxu0 %v190
    %286 = vmatmul.bf16.gmra.mxu0 %v86
    %v287 = vpop.f32.mrf.mxu0
    %v288 = vadd.f32 %v275, %v287
    %v289 = vpop.f32.mrf.mxu0
    %290 = vdwg.mxu0
    %291 = vmatpush.bf16.xpose.msra.mxu0 %v219
    %292 = vmatpush.bf16.xpose.msra.mxu0 %v215
    %293 = vmatpush.bf16.xpose.msra.mxu0 %v211
    %294 = vmatpush.bf16.xpose.msra.mxu0 %v207
    %295 = vmatpush.bf16.xpose.msra.mxu0 %v203
    %296 = vmatpush.bf16.xpose.msra.mxu0 %v199
    %297 = vmatpush.bf16.xpose.msra.mxu0 %v195
    %298 = vmatpush.bf16.xpose.msra.mxu0 %v191
    %299 = vmatmul.bf16.gmra.mxu0 %v87
    %v300 = vpop.f32.mrf.mxu0
    %v301 = vadd.f32 %v288, %v300
    %v302 = vpop.f32.mrf.mxu0
    %303 = vdwg.mxu0
    %v304 = vsub.f32 0.0, %v301
    %v305 = vmul.f32 %v304, 1.442695
    %v306 = vpow.pop %v305
    %v307 = vadd.f32 %v306, 1.0
    %v308 = vrcp.pop %v307
    %309 = vst [vmem:[#allocation7] sm:$0x3] %v308
    // Predicated region
    $region22: #{tpu_custom_call.1} parent=1 // pred_check
      _
    $region23: #{tpu_custom_call.1} parent=1 // pred_check_branch
      %311 = sbr.rel (0) target = $region25
    $region24: #{tpu_custom_call.1} parent=1 // pred_region
      %313 = vsyncadd [#allocation4], 0
      %s315 = sshll.u32 [#allocation7], 4
      %s316 = int_to_ptr.vmem [resolvable:$true] %s315
      %s317 = sshll.u32 %s3, 4
      %s318 = int_to_ptr.hbm [resolvable:$true] %s317
      %320 = dma.vmem_to_hbm [thread:$0]  %s316, 32, %s318, [#allocation4]
    $region25: #{tpu_custom_call.1} parent=1 // pred_fallthru
      _
    // Predicated region
    $region26: #{tpu_custom_call.1} parent=1 // pred_check
      _
    $region27: #{tpu_custom_call.1} parent=1 // pred_check_branch
      %322 = sbr.rel (0) target = $region29
    $region28: #{tpu_custom_call.1} parent=1 // pred_region
      %324 = dma.done [#allocation4], 32
    $region29: #{tpu_custom_call.1} parent=1 // pred_fallthru
      _
    %325 = vsyncpa [#allocation3], 1
    %326 = vsyncpa [#allocation6], 1
    %327 = vsyncpa [#allocation4], 1

</llo_original>
